<compile_context>
chip_gen: v6e
topology: v6e:2x2x1
jax: 0.10.0
libtpu: 0.0.40
codegen_flags: <defaults>
</compile_context>

<pallas_src>
import functools

import jax
import jax.numpy as jnp
from jax.experimental import pallas as pl
from jax.experimental.pallas import tpu as pltpu

IN_F = 2        # MountainCar observation size
HID = 32        # hidden width
OUT_F = 3       # number of actions
LANES = 128     # vreg lane width

# Packed parameter slab layout (PACK_ROWS x 128 lanes, f32):
#   rows  0..31 : W2  (32x32) in lanes 0..31, zeros elsewhere
#   rows 32..63 : W3  (32x3)  in lanes 32..34, zeros elsewhere
#   row  64     : W1 row 0 in lanes 0..31
#   row  65     : W1 row 1 in lanes 0..31
#   row  66     : b1       in lanes 0..31
#   row  67     : b2       in lanes 0..31
#   row  68     : b3       in lanes 32..34
#   rows 69..71 : zero padding to a multiple of 8 sublanes
# Only the regions named above are ever read with meaningful effect: the
# kernel slices lanes 0..31 of the W1/b1 rows, uses lanes >= 32 of the output
# only at 32..34, and adds b3 only to lanes >= 32, so stray nonzeros outside
# these regions cannot corrupt the visible results.
_W2_ROW = 0
_W3_ROW = 32
_VEC_ROW = 64
PACK_ROWS = 72


def _mlp_kernel(x_ref, w_ref, out_ref):
    x = x_ref[...]                                            # (tile_b, 2)

    # Static slices of the single packed VMEM operand are free.
    w1r0 = w_ref[_VEC_ROW + 0:_VEC_ROW + 1, 0:HID]            # (1, 32)
    w1r1 = w_ref[_VEC_ROW + 1:_VEC_ROW + 2, 0:HID]            # (1, 32)
    b1 = w_ref[_VEC_ROW + 2:_VEC_ROW + 3, 0:HID]              # (1, 32)
    b2 = w_ref[_VEC_ROW + 3:_VEC_ROW + 4, :]                  # (1, 128)
    b3 = w_ref[_VEC_ROW + 4:_VEC_ROW + 5, :]                  # (1, 128)

    # Layer 1: K=2 contraction on the VPU (broadcast mul-add); avoids MXU
    # push/drain latency for a 2-deep contraction.
    h1 = jnp.maximum(x[:, 0:1] * w1r0 + x[:, 1:2] * w1r1 + b1, 0.0)  # (tile_b, 32)

    # Layer 2 on the MXU, K=32; W2 is lane-padded to 128 so h2 is lane-dense
    # with the true features in lanes 0..31.
    h2 = jnp.dot(h1, w_ref[_W2_ROW:_W2_ROW + HID, :],
                 preferred_element_type=jnp.float32)
    h2 = jnp.maximum(h2 + b2, 0.0)                             # (tile_b, 128)

    # Layer 3 on the MXU, K=32; W3 lives in lanes 32..34 (no identity block).
    o = jnp.dot(h2[:, :HID], w_ref[_W3_ROW:_W3_ROW + HID, :],
                preferred_element_type=jnp.float32)            # (tile_b, 128)

    # Exact feature pass-through on the VPU (free slot under MXU/DMA path):
    #   lanes 0..31  <- h2 (features, bit-exact ReLU output)
    #   lanes 32..34 <- logits + b3
    # Single unmasked 128-lane store.
    lane = jax.lax.broadcasted_iota(jnp.int32, out_ref.shape, 1)
    out_ref[...] = jnp.where(lane < HID, h2, o + b3).astype(out_ref.dtype)


def _round_up(n, m):
    return ((n + m - 1) // m) * m


def _num_tensorcores():
    """Host-side check: 2 TensorCores per chip on v7x, 1 on v5e/v6e."""
    try:
        kind = jax.devices()[0].device_kind.lower()
    except Exception:  # pragma: no cover - defensive
        return 1
    return 2 if ("v7" in kind or "7x" in kind) else 1


def network_forward(x, packed_params, *, batch_tile=512):
    """Pallas equivalent of Network.forward. Returns (outputs, features)."""
    B = x.shape[0]
    n_cores = _num_tensorcores()
    B8 = _round_up(B, 8)                         # sublane alignment

    if n_cores > 1 and 16 <= B8 <= batch_tile * n_cores:
        # Mid-size batch on a 2-TC chip: force >=2 grid steps so the
        # "parallel" axis actually shards across both cores.
        tile_b = _round_up((B8 + n_cores - 1) // n_cores, 8)
    elif B8 <= batch_tile:
        tile_b = B8                              # tiny batch: single grid step
    else:
        tile_b = batch_tile                      # large batch: stream in tiles

    B_pad = _round_up(B8, tile_b)
    pad = B_pad - B
    x_pad = jnp.pad(x, ((0, pad), (0, 0))) if pad else x

    combined = pl.pallas_call(
        _mlp_kernel,
        out_shape=jax.ShapeDtypeStruct((B_pad, LANES), jnp.float32),
        grid_spec=pltpu.PrefetchScalarGridSpec(
            num_scalar_prefetch=0,
            grid=(B_pad // tile_b,),
            in_specs=[
                pl.BlockSpec((tile_b, IN_F), lambda i: (i, 0)),
                pl.BlockSpec((PACK_ROWS, LANES), lambda i: (0, 0)),
            ],
            out_specs=pl.BlockSpec((tile_b, LANES), lambda i: (i, 0)),
        ),
        compiler_params=pltpu.CompilerParams(
            dimension_semantics=("parallel",)),   # shards batch tiles over TCs
    )(x_pad, packed_params)

    features = combined[:B, :HID]                 # lanes 0..31
    outputs = combined[:B, HID:HID + OUT_F]       # lanes 32..34
    return outputs, features


def init_params(key):
    """Deterministic parameter init (PyTorch-style uniform fan-in bounds)."""
    ks = jax.random.split(key, 6)

    def lin(kw, kb, fan_in, fan_out):
        bound = 1.0 / jnp.sqrt(fan_in)
        # stored as (in, out) so the math is x @ W directly
        w = jax.random.uniform(kw, (fan_in, fan_out), jnp.float32, -bound, bound)
        b = jax.random.uniform(kb, (1, fan_out), jnp.float32, -bound, bound)
        return w, b

    w1, b1 = lin(ks[0], ks[1], IN_F, HID)
    w2, b2 = lin(ks[2], ks[3], HID, HID)
    w3, b3 = lin(ks[4], ks[5], HID, OUT_F)
    return (w1, b1, w2, b2, w3, b3)


def pack_params(params):
    """Pack all weights/biases into one lane-dense (72, 128) f32 slab."""
    w1, b1, w2, b2, w3, b3 = params
    slab = jnp.zeros((PACK_ROWS, LANES), jnp.float32)
    slab = slab.at[_W2_ROW:_W2_ROW + HID, 0:HID].set(w2)
    slab = slab.at[_W3_ROW:_W3_ROW + HID, HID:HID + OUT_F].set(w3)
    slab = slab.at[_VEC_ROW + 0, 0:HID].set(w1[0])
    slab = slab.at[_VEC_ROW + 1, 0:HID].set(w1[1])
    slab = slab.at[_VEC_ROW + 2, 0:HID].set(b1.reshape(-1))
    slab = slab.at[_VEC_ROW + 3, 0:HID].set(b2.reshape(-1))
    slab = slab.at[_VEC_ROW + 4, HID:HID + OUT_F].set(b3.reshape(-1))
    return slab


def _reference(x, params):
    w1, b1, w2, b2, w3, b3 = params
    dot = functools.partial(jnp.dot, precision=jax.lax.Precision.HIGHEST)
    h1 = jnp.maximum(dot(x, w1) + b1, 0.0)
    h2 = jnp.maximum(dot(h1, w2) + b2, 0.0)
    return dot(h2, w3) + b3, h2


# TODO(synk): the RL step (argmax action select / target-net forward / TD
# error) lives outside this module; fusing it into this same pallas_call
# would amortize the per-call dispatch + weight DMA further (largest
# remaining end-to-end lever at B~2) but is beyond the Network.forward spec.

if __name__ == "__main__":
    key = jax.random.PRNGKey(0)
    k_param, k_x = jax.random.split(key)

    params = init_params(k_param)
    packed = pack_params(params)

    fwd = jax.jit(network_forward, static_argnames=("batch_tile",))

    # MountainCar observation is 2-dim; small batch of 2.
    x = jax.random.normal(k_x, (2, IN_F), dtype=jnp.float32)
    outputs, features = fwd(x, packed)
    jax.block_until_ready((outputs, features))

    ref_out, ref_feat = _reference(x, params)
    assert outputs.shape == (2, OUT_F) and features.shape == (2, HID)
    assert jnp.allclose(outputs, ref_out, atol=1e-4, rtol=1e-4)
    assert jnp.allclose(features, ref_feat, atol=1e-4, rtol=1e-4)

    # Odd batch exercises the sublane padding / slice-back path.
    x2 = jax.random.normal(jax.random.PRNGKey(1), (11, IN_F), dtype=jnp.float32)
    o2, f2 = fwd(x2, packed)
    jax.block_until_ready((o2, f2))
    r_o2, r_f2 = _reference(x2, params)
    assert o2.shape == (11, OUT_F) and f2.shape == (11, HID)
    assert jnp.allclose(o2, r_o2, atol=1e-4, rtol=1e-4)
    assert jnp.allclose(f2, r_f2, atol=1e-4, rtol=1e-4)

    # Multi-tile path: small batch_tile forces several grid steps on any chip
    # (and the 2-way split on v7x).
    x3 = jax.random.normal(jax.random.PRNGKey(2), (40, IN_F), dtype=jnp.float32)
    o3, f3 = fwd(x3, packed, batch_tile=16)
    jax.block_until_ready((o3, f3))
    r_o3, r_f3 = _reference(x3, params)
    assert o3.shape == (40, OUT_F) and f3.shape == (40, HID)
    assert jnp.allclose(o3, r_o3, atol=1e-4, rtol=1e-4)
    assert jnp.allclose(f3, r_f3, atol=1e-4, rtol=1e-4)

    print("KERNEL_OK")
</pallas_src>

<mosaic_0001>
module attributes {stable_mosaic.version = 11 : i64} {
  func.func @_mlp_kernel(%arg0: i32, %arg1: memref<8x2xf32, #tpu.memory_space<vmem>>, %arg2: memref<72x128xf32, #tpu.memory_space<vmem>>, %arg3: memref<8x128xf32, #tpu.memory_space<vmem>>) attributes {dimension_semantics = [#tpu.dimension_semantics<parallel>], iteration_bounds = array<i64: 1>, scalar_prefetch = 0 : i64, scratch_operands = 0 : i64, tpu.core_type = #tpu.core_type<tc>, window_params = [{transform_indices = @transform_0, window_bounds = array<i64: 8, 2>}, {pipeline_mode = #tpu.pipeline_mode<synchronous>, transform_indices = @transform_1, window_bounds = array<i64: 72, 128>}, {transform_indices = @transform_2, window_bounds = array<i64: 8, 128>}]} {
    %c0 = arith.constant 0 : index
    %c0_0 = arith.constant 0 : index
    %0 = vector.load %arg1[%c0, %c0_0] : memref<8x2xf32, #tpu.memory_space<vmem>>, vector<8x2xf32>
    %c64 = arith.constant 64 : index
    %c0_1 = arith.constant 0 : index
    %1 = vector.load %arg2[%c64, %c0_1] : memref<72x128xf32, #tpu.memory_space<vmem>>, vector<1x32xf32>
    %c65 = arith.constant 65 : index
    %c0_2 = arith.constant 0 : index
    %2 = vector.load %arg2[%c65, %c0_2] : memref<72x128xf32, #tpu.memory_space<vmem>>, vector<1x32xf32>
    %c66 = arith.constant 66 : index
    %c0_3 = arith.constant 0 : index
    %3 = vector.load %arg2[%c66, %c0_3] : memref<72x128xf32, #tpu.memory_space<vmem>>, vector<1x32xf32>
    %c67 = arith.constant 67 : index
    %c0_4 = arith.constant 0 : index
    %4 = vector.load %arg2[%c67, %c0_4] : memref<72x128xf32, #tpu.memory_space<vmem>>, vector<1x128xf32>
    %c68 = arith.constant 68 : index
    %c0_5 = arith.constant 0 : index
    %5 = vector.load %arg2[%c68, %c0_5] : memref<72x128xf32, #tpu.memory_space<vmem>>, vector<1x128xf32>
    %6 = vector.extract_strided_slice %0 {offsets = [0, 0], sizes = [8, 1], strides = [1, 1]} : vector<8x2xf32> to vector<8x1xf32>
    %7 = vector.broadcast %6 : vector<8x1xf32> to vector<8x32xf32>
    %8 = vector.broadcast %1 : vector<1x32xf32> to vector<8x32xf32>
    %9 = arith.mulf %7, %8 : vector<8x32xf32>
    %10 = vector.extract_strided_slice %0 {offsets = [0, 1], sizes = [8, 1], strides = [1, 1]} : vector<8x2xf32> to vector<8x1xf32>
    %11 = vector.broadcast %10 : vector<8x1xf32> to vector<8x32xf32>
    %12 = vector.broadcast %2 : vector<1x32xf32> to vector<8x32xf32>
    %13 = arith.mulf %11, %12 : vector<8x32xf32>
    %14 = arith.addf %9, %13 : vector<8x32xf32>
    %15 = vector.broadcast %3 : vector<1x32xf32> to vector<8x32xf32>
    %16 = arith.addf %14, %15 : vector<8x32xf32>
    %cst = arith.constant 0.000000e+00 : f32
    %17 = vector.broadcast %cst : f32 to vector<8x32xf32>
    %18 = arith.maximumf %16, %17 : vector<8x32xf32>
    %c0_6 = arith.constant 0 : index
    %c0_7 = arith.constant 0 : index
    %19 = vector.load %arg2[%c0_6, %c0_7] : memref<72x128xf32, #tpu.memory_space<vmem>>, vector<32x128xf32>
    %cst_8 = arith.constant dense<0.000000e+00> : vector<8x128xf32>
    %20 = tpu.matmul %18, %19, %cst_8 {dimension_numbers = #tpu.dot_dimension_numbers<[1], [0], [0], [1], [0, 0, 1, 1], [], []>} : vector<8x32xf32>, vector<32x128xf32>, vector<8x128xf32> -> vector<8x128xf32>
    %21 = vector.broadcast %4 : vector<1x128xf32> to vector<8x128xf32>
    %22 = arith.addf %20, %21 : vector<8x128xf32>
    %cst_9 = arith.constant 0.000000e+00 : f32
    %23 = vector.broadcast %cst_9 : f32 to vector<8x128xf32>
    %24 = arith.maximumf %22, %23 : vector<8x128xf32>
    %25 = vector.extract_strided_slice %24 {offsets = [0, 0], sizes = [8, 32], strides = [1, 1]} : vector<8x128xf32> to vector<8x32xf32>
    %c32 = arith.constant 32 : index
    %c0_10 = arith.constant 0 : index
    %26 = vector.load %arg2[%c32, %c0_10] : memref<72x128xf32, #tpu.memory_space<vmem>>, vector<32x128xf32>
    %cst_11 = arith.constant dense<0.000000e+00> : vector<8x128xf32>
    %27 = tpu.matmul %25, %26, %cst_11 {dimension_numbers = #tpu.dot_dimension_numbers<[1], [0], [0], [1], [0, 0, 1, 1], [], []>} : vector<8x32xf32>, vector<32x128xf32>, vector<8x128xf32> -> vector<8x128xf32>
    %28 = tpu.iota {dimensions = array<i32: 1>} : vector<8x128xi32>
    %c32_i32 = arith.constant 32 : i32
    %29 = vector.broadcast %c32_i32 : i32 to vector<8x128xi32>
    %30 = arith.cmpi slt, %28, %29 : vector<8x128xi32>
    %31 = vector.broadcast %5 : vector<1x128xf32> to vector<8x128xf32>
    %32 = arith.addf %27, %31 : vector<8x128xf32>
    %33 = arith.select %30, %24, %32 : vector<8x128xi1>, vector<8x128xf32>
    %c0_12 = arith.constant 0 : index
    %c0_13 = arith.constant 0 : index
    %34 = vector.load %arg3[%c0_12, %c0_13] : memref<8x128xf32, #tpu.memory_space<vmem>>, vector<8x128xf32>
    tpu.vector_store %arg3[%c0_12, %c0_13], %33 {strides = array<i32>} : memref<8x128xf32, #tpu.memory_space<vmem>>, vector<8x128xf32>,
    return
  }
  func.func @transform_0(%arg0: i32) -> (i32, i32) {
    %c0_i32 = arith.constant 0 : i32
    %c0_i32_0 = arith.constant 0 : i32
    return %arg0, %c0_i32 : i32, i32
  }
  func.func @transform_1(%arg0: i32) -> (i32, i32) {
    %c0_i32 = arith.constant 0 : i32
    %c0_i32_0 = arith.constant 0 : i32
    %c0_i32_1 = arith.constant 0 : i32
    return %c0_i32, %c0_i32_0 : i32, i32
  }
  func.func @transform_2(%arg0: i32) -> (i32, i32) {
    %c0_i32 = arith.constant 0 : i32
    %c0_i32_0 = arith.constant 0 : i32
    return %arg0, %c0_i32 : i32, i32
  }
}

</mosaic_0001>

<llo_original>
// kernel: network_forward.1
$region0: #{network_forward.1}
  #allocation0 [shape = 'u32[]', space=smem, size = 0x4, offset = 0x4, fixed_abs, tag = 'smem constant byte address 0x4 - core index']
  #allocation1 [shape = 'u32[144,128]{1,0:T(1,128)}', space=vmem, size = 0x12000, scoped, tag = 'internal scratch']
  %s0 = inlined_call_operand.vmem [shape: f32[8,2], index: 0, kind: input, shape index: {}]
  %s1 = inlined_call_operand.hbm [shape: f32[72,128], index: 1, kind: input, shape index: {}]
  %s2 = inlined_call_operand.vmem [shape: f32[8,128], index: 2, kind: output, shape index: {}]
  %s3 = sld [smem:[#allocation0]]
  $region22: #{network_forward.1} parent=0
    _
  %s5 = ssub.s32 1, %s3
  %s6 = scalar_select 0, %s5, %s3
  $region1: #{network_forward.1} parent=0
    #allocation2 [shape = 'u8[36864]{0}', space=vmem, size = 0x9000, scoped, tag = 'input window, operand 1, single buffered']
    #allocation3 [shape = 's32[1]{0}', space=sflag, size = 0x4, scoped, tag = 'scoped memory for network_forward.1']
    %7 = vsyncpa [#allocation3], 0
    // Predicated region
    $region2: #{network_forward.1} parent=1 // pred_check
      _
    $region3: #{network_forward.1} parent=1 // pred_check_branch
      %9 = sbr.rel (0) target = $region5
    $region4: #{network_forward.1} parent=1 // pred_region
      _
    $region5: #{network_forward.1} parent=1 // pred_fallthru
      _
    // Predicated region
    $region6: #{network_forward.1} parent=1 // pred_check
      _
    $region7: #{network_forward.1} parent=1 // pred_check_branch
      %11 = sbr.rel (0) target = $region9
    $region8: #{network_forward.1} parent=1 // pred_region
      %s13 = ssub.s32 1152, 1152
      %14 = vsyncadd [#allocation3], %s13
      %s15 = sshll.u32 [#allocation2], 4
      %s16 = int_to_ptr.vmem [resolvable:$true] %s15
      %21 = dma.hbm_to_vmem [thread:$0]  %s1, 1152, %s16, [#allocation3], 128, 128, 8
    $region9: #{network_forward.1} parent=1 // pred_fallthru
      _
    // Predicated region
    $region10: #{network_forward.1} parent=1 // pred_check
      _
    $region11: #{network_forward.1} parent=1 // pred_check_branch
      %23 = sbr.rel (0) target = $region13
    $region12: #{network_forward.1} parent=1 // pred_region
      %24 = dma.done [#allocation3], 1152
    $region13: #{network_forward.1} parent=1 // pred_fallthru
      _
    %v25 = vld [vmem:[%s0] sm:$0xff]
    %v26 = vld [vmem:[#allocation2 + $0x40] sm:$0x1]
    %v27 = vld [vmem:[#allocation2 + $0x41] sm:$0x1]
    %v28 = vld [vmem:[#allocation2 + $0x42] sm:$0x1]
    %v29 = vld [vmem:[#allocation2 + $0x43] sm:$0x1]
    %v30 = vld [vmem:[#allocation2 + $0x44] sm:$0x1]
    %32 = vset.pattern.permute.xlu0 0
    %33 = vperm.xlu0 %32, %v25
    %v34 = vpop.permute.xlu0 %33
    %v36 = vlaneseq
    %v37 = vshrl.u32 %v36, 7
    %v38 = vsub.s32 0, %v37
    %v39 = vrot.slane %v26, %v38
    %v40 = vmul.f32 %v34, %v39
    %41 = vset.pattern.permute.xlu0 1
    %42 = vperm.xlu0 %41, %v25
    %v43 = vpop.permute.xlu0 %42
    %v45 = vlaneseq
    %v46 = vshrl.u32 %v45, 7
    %v47 = vsub.s32 0, %v46
    %v48 = vrot.slane %v27, %v47
    %v49 = vmul.f32 %v43, %v48
    %v50 = vadd.f32 %v40, %v49
    %v51 = vlaneseq
    %v52 = vshrl.u32 %v51, 7
    %v53 = vsub.s32 0, %v52
    %v54 = vrot.slane %v28, %v53
    %v55 = vadd.f32 %v50, %v54
    %v56 = vmax.f32 %v55, 0.0
    %v57 = vld [vmem:[#allocation2] sm:$0xff]
    %v58 = vld [vmem:[#allocation2 + $0x8] sm:$0xff]
    %v59 = vld [vmem:[#allocation2 + $0x10] sm:$0xff]
    %v60 = vld [vmem:[#allocation2 + $0x18] sm:$0xff]
    %v61 = vlaneseq
    %v62 = vshrl.u32 %v61, 7
    %v63 = vsub.s32 0, %v62
    %v64 = vrot.slane %v29, %v63
    %vm65 = vcmask 261120
    %v67 = vsel %vm65, %v56, 0
    %69 = vmatprep.subr.mxu0 0.0
    %70 = vmatpush1.msra.mxu0 0.0
    %71 = vmatprep.subr.mxu0 0.0
    %72 = vmatpush1.msra.mxu0 0.0
    %73 = vmatprep.subr.mxu0 0.0
    %74 = vmatpush1.msra.mxu0 0.0
    %75 = vmatprep.subr.mxu0 0.0
    %76 = vmatpush1.msra.mxu0 0.0
    %77 = vmatprep.subr.mxu0 0.0
    %78 = vmatpush1.msra.mxu0 0.0
    %79 = vmatprep.subr.mxu0 0.0
    %80 = vmatpush1.msra.mxu0 0.0
    %81 = vmatprep.subr.mxu0 0.0
    %82 = vmatpush1.msra.mxu0 0.0
    %83 = vmatprep.subr.mxu0 0.0
    %84 = vmatpush1.msra.mxu0 0.0
    %85 = vmatprep.subr.mxu0 0.0
    %86 = vmatpush1.msra.mxu0 0.0
    %87 = vmatprep.subr.mxu0 0.0
    %88 = vmatpush1.msra.mxu0 0.0
    %89 = vmatprep.subr.mxu0 0.0
    %90 = vmatpush1.msra.mxu0 0.0
    %91 = vmatprep.subr.mxu0 0.0
    %92 = vmatpush1.msra.mxu0 0.0
    %93 = vmatprep.subr.mxu0 0.0
    %94 = vmatpush1.msra.mxu0 %v60
    %95 = vmatprep.subr.mxu0 0.0
    %96 = vmatpush1.msra.mxu0 %v59
    %97 = vmatprep.subr.mxu0 0.0
    %98 = vmatpush1.msra.mxu0 %v58
    %99 = vmatprep.subr.mxu0 0.0
    %100 = vmatpush1.msra.mxu0 %v57
    %101 = vmatprep.subr.mxu0 0.0
    %102 = vmatpush2.msra.mxu0 0.0
    %103 = vmatprep.subr.mxu0 0.0
    %104 = vmatpush2.msra.mxu0 0.0
    %105 = vmatprep.subr.mxu0 0.0
    %106 = vmatpush2.msra.mxu0 0.0
    %107 = vmatprep.subr.mxu0 0.0
    %108 = vmatpush2.msra.mxu0 0.0
    %109 = vmatprep.subr.mxu0 0.0
    %110 = vmatpush2.msra.mxu0 0.0
    %111 = vmatprep.subr.mxu0 0.0
    %112 = vmatpush2.msra.mxu0 0.0
    %113 = vmatprep.subr.mxu0 0.0
    %114 = vmatpush2.msra.mxu0 0.0
    %115 = vmatprep.subr.mxu0 0.0
    %116 = vmatpush2.msra.mxu0 0.0
    %117 = vmatprep.subr.mxu0 0.0
    %118 = vmatpush2.msra.mxu0 0.0
    %119 = vmatprep.subr.mxu0 0.0
    %120 = vmatpush2.msra.mxu0 0.0
    %121 = vmatprep.subr.mxu0 0.0
    %122 = vmatpush2.msra.mxu0 0.0
    %123 = vmatprep.subr.mxu0 0.0
    %124 = vmatpush2.msra.mxu0 0.0
    %125 = vmatprep.subr.mxu0 0.0
    %126 = vmatpush2.msra.mxu0 0.0
    %127 = vmatprep.subr.mxu0 0.0
    %128 = vmatpush2.msra.mxu0 0.0
    %129 = vmatprep.subr.mxu0 0.0
    %130 = vmatpush2.msra.mxu0 0.0
    %131 = vmatprep.subr.mxu0 0.0
    %132 = vmatpush2.msra.mxu0 0.0
    %133 = vmatprep.mubr.f32.mxu0 0.0
    %134 = vmatmul.mubr.f32.gmra.mxu0 %v67
    %v135 = vpop.f32.mrf.mxu0
    %v136 = vadd.f32 %v64, %v135
    %v137 = vpop.f32.mrf.mxu0
    %138 = vdwg.mxu0
    %v139 = vmax.f32 %v136, 0.0
    %v140 = vld [vmem:[#allocation2 + $0x20] sm:$0xff]
    %v141 = vld [vmem:[#allocation2 + $0x28] sm:$0xff]
    %v142 = vld [vmem:[#allocation2 + $0x30] sm:$0xff]
    %v143 = vld [vmem:[#allocation2 + $0x38] sm:$0xff]
    %v144 = vlaneseq
    %v145 = vand.u32 %v144, 127
    %vm146 = vcmp.lt.s32.totalorder %v145, 32
    %v147 = vlaneseq
    %v148 = vshrl.u32 %v147, 7
    %v149 = vsub.s32 0, %v148
    %v150 = vrot.slane %v30, %v149
    %v152 = vsel %vm65, %v139, 0
    %154 = vmatprep.subr.mxu0 0.0
    %155 = vmatpush1.msra.mxu0 0.0
    %156 = vmatprep.subr.mxu0 0.0
    %157 = vmatpush1.msra.mxu0 0.0
    %158 = vmatprep.subr.mxu0 0.0
    %159 = vmatpush1.msra.mxu0 0.0
    %160 = vmatprep.subr.mxu0 0.0
    %161 = vmatpush1.msra.mxu0 0.0
    %162 = vmatprep.subr.mxu0 0.0
    %163 = vmatpush1.msra.mxu0 0.0
    %164 = vmatprep.subr.mxu0 0.0
    %165 = vmatpush1.msra.mxu0 0.0
    %166 = vmatprep.subr.mxu0 0.0
    %167 = vmatpush1.msra.mxu0 0.0
    %168 = vmatprep.subr.mxu0 0.0
    %169 = vmatpush1.msra.mxu0 0.0
    %170 = vmatprep.subr.mxu0 0.0
    %171 = vmatpush1.msra.mxu0 0.0
    %172 = vmatprep.subr.mxu0 0.0
    %173 = vmatpush1.msra.mxu0 0.0
    %174 = vmatprep.subr.mxu0 0.0
    %175 = vmatpush1.msra.mxu0 0.0
    %176 = vmatprep.subr.mxu0 0.0
    %177 = vmatpush1.msra.mxu0 0.0
    %178 = vmatprep.subr.mxu0 0.0
    %179 = vmatpush1.msra.mxu0 %v143
    %180 = vmatprep.subr.mxu0 0.0
    %181 = vmatpush1.msra.mxu0 %v142
    %182 = vmatprep.subr.mxu0 0.0
    %183 = vmatpush1.msra.mxu0 %v141
    %184 = vmatprep.subr.mxu0 0.0
    %185 = vmatpush1.msra.mxu0 %v140
    %186 = vmatprep.subr.mxu0 0.0
    %187 = vmatpush2.msra.mxu0 0.0
    %188 = vmatprep.subr.mxu0 0.0
    %189 = vmatpush2.msra.mxu0 0.0
    %190 = vmatprep.subr.mxu0 0.0
    %191 = vmatpush2.msra.mxu0 0.0
    %192 = vmatprep.subr.mxu0 0.0
    %193 = vmatpush2.msra.mxu0 0.0
    %194 = vmatprep.subr.mxu0 0.0
    %195 = vmatpush2.msra.mxu0 0.0
    %196 = vmatprep.subr.mxu0 0.0
    %197 = vmatpush2.msra.mxu0 0.0
    %198 = vmatprep.subr.mxu0 0.0
    %199 = vmatpush2.msra.mxu0 0.0
    %200 = vmatprep.subr.mxu0 0.0
    %201 = vmatpush2.msra.mxu0 0.0
    %202 = vmatprep.subr.mxu0 0.0
    %203 = vmatpush2.msra.mxu0 0.0
    %204 = vmatprep.subr.mxu0 0.0
    %205 = vmatpush2.msra.mxu0 0.0
    %206 = vmatprep.subr.mxu0 0.0
    %207 = vmatpush2.msra.mxu0 0.0
    %208 = vmatprep.subr.mxu0 0.0
    %209 = vmatpush2.msra.mxu0 0.0
    %210 = vmatprep.subr.mxu0 0.0
    %211 = vmatpush2.msra.mxu0 0.0
    %212 = vmatprep.subr.mxu0 0.0
    %213 = vmatpush2.msra.mxu0 0.0
    %214 = vmatprep.subr.mxu0 0.0
    %215 = vmatpush2.msra.mxu0 0.0
    %216 = vmatprep.subr.mxu0 0.0
    %217 = vmatpush2.msra.mxu0 0.0
    %218 = vmatprep.mubr.f32.mxu0 0.0
    %219 = vmatmul.mubr.f32.gmra.mxu0 %v152
    %v220 = vpop.f32.mrf.mxu0
    %v221 = vadd.f32 %v150, %v220
    %v222 = vpop.f32.mrf.mxu0
    %223 = vdwg.mxu0
    %v224 = vsel %vm146, %v139, %v221
    %225 = vst [vmem:[%s2] sm:$0xff] %v224
    // Predicated region
    $region14: #{network_forward.1} parent=1 // pred_check
      _
    $region15: #{network_forward.1} parent=1 // pred_check_branch
      %227 = sbr.rel (0) target = $region17
    $region16: #{network_forward.1} parent=1 // pred_region
      _
    $region17: #{network_forward.1} parent=1 // pred_fallthru
      _
    // Predicated region
    $region18: #{network_forward.1} parent=1 // pred_check
      _
    $region19: #{network_forward.1} parent=1 // pred_check_branch
      %229 = sbr.rel (0) target = $region21
    $region20: #{network_forward.1} parent=1 // pred_region
      _
    $region21: #{network_forward.1} parent=1 // pred_fallthru
      _
    %230 = vsyncpa [#allocation3], 1

</llo_original>
